<compile_context>
chip_gen: v5e
topology: v5e:2x2
jax: 0.10.0
libtpu: 0.0.40
codegen_flags: <defaults>
</compile_context>

<pallas_src>
import jax
import jax.numpy as jnp
from jax import lax
from jax.experimental import pallas as pl
from jax.experimental.pallas import tpu as pltpu


def _cdiv(a, b):
    return -(-a // b)


def _round_up(x, m):
    return ((x + m - 1) // m) * m


def _embed_gather_add_kernel(tok_ids_smem,   # scalar prefetch: (n_pad,) int32 in SMEM
                             pos_ids_ref,    # (tile, 1) int32 VMEM block
                             tok_hbm,        # (V, H) token table, HBM (ANY)
                             pos_tab_ref,    # (P, H) position table, VMEM resident
                             out_ref,        # (tile, H) output block
                             gbuf,           # (2, tile, H) VMEM gather scratch
                             sem):           # (2,) DMA semaphores
    _, tile, H = gbuf.shape
    P = pos_tab_ref.shape[0]
    i = pl.program_id(0)
    nt = pl.num_programs(0)
    slot = i & 1

    def issue_tile(t, s):
        """Issue one row-gather DMA per token id of tile `t` into gbuf[s]."""
        base = t * tile

        def issue8(r8, carry):
            r0 = r8 * 8
            for k in range(8):                       # manual unroll-by-8 so the
                r = r0 + k                           # descriptor issues pack into
                row = tok_ids_smem[base + r]         # the vector-misc slot
                pltpu.make_async_copy(
                    tok_hbm.at[pl.ds(row, 1), :],
                    gbuf.at[s, pl.ds(r, 1), :],
                    sem.at[s],
                ).start()
            return carry

        lax.fori_loop(0, tile // 8, issue8, 0)       # tile is a multiple of 8

    # Prime: the first grid step issues its own tile into slot 0.
    @pl.when(i == 0)
    def _():
        issue_tile(0, 0)

    # Double buffering: issue tile i+1's row gathers into the other slot BEFORE
    # waiting on this tile, so they overlap this tile's compute + store.
    # (ids already sit in SMEM via scalar prefetch, read before any wait).
    @pl.when(i + 1 < nt)
    def _():
        issue_tile(i + 1, 1 - slot)

    # Position rows via one-hot MXU matmul against the VMEM-resident table,
    # done in the table's native dtype (bit-exact gather), f32 accumulation.
    pos_ids = pos_ids_ref[...]                                   # (tile, 1) int32
    onehot = (lax.broadcasted_iota(jnp.int32, (tile, P), 1) == pos_ids)
    pos_rows = jnp.dot(onehot.astype(pos_tab_ref.dtype), pos_tab_ref[...],
                       preferred_element_type=jnp.float32)       # (tile, H) f32

    # Single aggregate wait: every row DMA of this tile signals sem[slot]; one
    # descriptor of total size (tile, H) consumes the whole count at once.
    pltpu.make_async_copy(
        tok_hbm.at[pl.ds(0, tile), :],
        gbuf.at[slot],
        sem.at[slot],
    ).wait()

    # Dense add + store in the output dtype (no redundant whole-tile f32 casts;
    # matches the PyTorch add, which happens in the parameter dtype).
    out_ref[...] = (gbuf[slot].astype(out_ref.dtype)
                    + pos_rows.astype(out_ref.dtype))


def siglip_text_embeddings(input_ids,
                           token_embedding,
                           position_embedding,
                           position_ids=None,
                           *,
                           tile_rows=512):
    """JAX/Pallas equivalent of SiglipTextEmbeddings.forward (input_ids path)."""
    B, S = input_ids.shape
    V, H = token_embedding.shape
    P, H2 = position_embedding.shape
    assert H == H2, "token / position embedding hidden sizes must match"
    if S > P:
        raise ValueError(
            f"Sequence length must be less than max_position_embeddings "
            f"(got sequence length: {S} and max_position_embeddings: {P})")

    out_dtype = jnp.result_type(token_embedding.dtype, position_embedding.dtype)

    if position_ids is None:
        position_ids = jnp.arange(S, dtype=jnp.int32)[None, :]
    position_ids = jnp.broadcast_to(position_ids.astype(jnp.int32), (B, S))

    n = B * S
    # Tile selection: multiple of 8 (dense sublane stores), at least 2 grid
    # steps when possible (so the double-buffered gather has something to
    # overlap with, and both v7x TensorCores get work if sharded), capped by
    # tile_rows and by the vocab size (keeps the aggregate-wait dummy
    # descriptor `tok_hbm[0:tile]` in-bounds).
    tile = min(int(tile_rows), _round_up(_cdiv(n, 2), 8), _round_up(n, 8))
    tile = _round_up(max(tile, 8), 8)
    if V >= 8:
        tile = min(tile, (V // 8) * 8)
    num_tiles = _cdiv(n, tile)
    n_pad = num_tiles * tile

    # nn.Embedding would raise on out-of-range ids; here ids are clipped so the
    # manual row DMAs are always in-bounds (OOB DMA is a hardware fault on TPU).
    flat_tok = jnp.clip(input_ids.reshape(n).astype(jnp.int32), 0, V - 1)
    flat_pos = jnp.clip(position_ids.reshape(n), 0, P - 1)
    if n_pad != n:
        pad = n_pad - n
        flat_tok = jnp.concatenate([flat_tok, jnp.zeros((pad,), jnp.int32)])
        flat_pos = jnp.concatenate([flat_pos, jnp.zeros((pad,), jnp.int32)])
    pos_col = flat_pos.reshape(n_pad, 1)

    tok_bytes = jnp.dtype(token_embedding.dtype).itemsize
    pos_bytes = jnp.dtype(position_embedding.dtype).itemsize
    out_bytes = jnp.dtype(out_dtype).itemsize

    # VMEM budget: double-buffered gather scratch + double-buffered output
    # block + resident position table + position-id block.
    vmem_budget = (2 * tile * H * tok_bytes
                   + 2 * tile * H * out_bytes
                   + 2 * P * H * pos_bytes
                   + 2 * tile * 4)
    vmem_limit = None
    if vmem_budget > 12 * 1024 * 1024:
        vmem_limit = min(int(vmem_budget * 3) // 2 + (4 << 20), 96 << 20)

    cost = pl.CostEstimate(
        flops=2 * n_pad * P * H,                       # one-hot position matmul
        transcendentals=0,
        bytes_accessed=(n_pad * H * (tok_bytes + out_bytes)
                        + P * H * pos_bytes + 8 * n_pad),
    )

    grid_spec = pltpu.PrefetchScalarGridSpec(
        num_scalar_prefetch=1,                         # flat token ids -> SMEM
        grid=(num_tiles,),
        in_specs=[
            # per-tile position ids (tiny VMEM block)
            pl.BlockSpec((tile, 1), lambda i, tok: (i, 0)),
            # token embedding table stays in HBM; rows gathered by manual DMA
            pl.BlockSpec(memory_space=pl.ANY),
            # position embedding table: full, constant index map -> VMEM resident
            pl.BlockSpec((P, H), lambda i, tok: (0, 0)),
        ],
        out_specs=pl.BlockSpec((tile, H), lambda i, tok: (i, 0)),
        scratch_shapes=[
            pltpu.VMEM((2, tile, H), token_embedding.dtype),
            pltpu.SemaphoreType.DMA((2,)),
        ],
    )

    out_flat = pl.pallas_call(
        _embed_gather_add_kernel,
        out_shape=jax.ShapeDtypeStruct((n_pad, H), out_dtype),
        grid_spec=grid_spec,
        cost_estimate=cost,
        compiler_params=pltpu.CompilerParams(
            # "arbitrary": grid steps carry manual double-buffer state
            # (step i issues step i+1's DMAs), so the axis must run in order.
            dimension_semantics=("arbitrary",),
            vmem_limit_bytes=vmem_limit),
    )(flat_tok, pos_col, token_embedding, position_embedding)

    return out_flat[:n].reshape(B, S, H)


if __name__ == "__main__":
    # Small synthetic config (deterministic init; no checkpoint load).
    VOCAB = 64          # config.vocab_size
    MAX_POS = 16        # config.max_position_embeddings
    HIDDEN = 128        # config.hidden_size (lane-aligned)
    B, S = 2, 8

    key = jax.random.PRNGKey(0)
    k_tok, k_pos, k_ids = jax.random.split(key, 3)

    token_embedding = (jax.random.normal(k_tok, (VOCAB, HIDDEN), jnp.float32)
                       * 0.02)
    position_embedding = (jax.random.normal(k_pos, (MAX_POS, HIDDEN),
                                            jnp.float32) * 0.02)
    input_ids = jax.random.randint(k_ids, (B, S), 0, VOCAB, dtype=jnp.int32)

    # --- default position_ids path (exercises the 2-tile double buffer) ---
    out = siglip_text_embeddings(input_ids, token_embedding, position_embedding)
    out = jax.block_until_ready(out)

    ref = (jnp.take(token_embedding, input_ids, axis=0)
           + jnp.take(position_embedding, jnp.arange(S), axis=0)[None, :, :])
    assert out.shape == (B, S, HIDDEN)
    assert jnp.allclose(out, ref, atol=1e-5, rtol=1e-5)

    # --- multi-tile + padding + explicit position_ids path ---
    B2, S2 = 3, 7
    k_ids2, k_pids2 = jax.random.split(jax.random.PRNGKey(1), 2)
    ids2 = jax.random.randint(k_ids2, (B2, S2), 0, VOCAB, dtype=jnp.int32)
    pids2 = jax.random.randint(k_pids2, (B2, S2), 0, MAX_POS, dtype=jnp.int32)
    out2 = siglip_text_embeddings(ids2, token_embedding, position_embedding,
                                  position_ids=pids2, tile_rows=8)
    out2 = jax.block_until_ready(out2)
    ref2 = (jnp.take(token_embedding, ids2, axis=0)
            + jnp.take(position_embedding, pids2, axis=0))
    assert out2.shape == (B2, S2, HIDDEN)
    assert jnp.allclose(out2, ref2, atol=1e-5, rtol=1e-5)

    print("KERNEL_OK")
</pallas_src>

<mosaic_0001>
module attributes {stable_mosaic.version = 11 : i64} {
  func.func @_embed_gather_add_kernel(%arg0: i32, %arg1: memref<16xi32, #tpu.memory_space<smem>>, %arg2: memref<8x1xi32, #tpu.memory_space<vmem>>, %arg3: memref<64x128xf32, #tpu.memory_space<any>>, %arg4: memref<16x128xf32, #tpu.memory_space<vmem>>, %arg5: memref<8x128xf32, #tpu.memory_space<vmem>>, %arg6: memref<2x8x128xf32, #tpu.memory_space<vmem>>, %arg7: memref<2x!tpu.dma_semaphore, #tpu.memory_space<semaphore_mem>>) attributes {dimension_semantics = [#tpu.dimension_semantics<arbitrary>], iteration_bounds = array<i64: 2>, scalar_prefetch = 1 : i64, scratch_operands = 2 : i64, tpu.core_type = #tpu.core_type<tc>, window_params = [{transform_indices = @transform_0, window_bounds = array<i64: 8, 1>}, {}, {pipeline_mode = #tpu.pipeline_mode<synchronous>, transform_indices = @transform_2, window_bounds = array<i64: 16, 128>}, {transform_indices = @transform_3, window_bounds = array<i64: 8, 128>}]} {
    %c1_i32 = arith.constant 1 : i32
    %0 = arith.andi %arg0, %c1_i32 : i32
    %c0_i32 = arith.constant 0 : i32
    %1 = arith.cmpi eq, %arg0, %c0_i32 : i32
    %2 = arith.extui %1 : i1 to i32
    %c0_i32_0 = arith.constant 0 : i32
    %3 = arith.cmpi ne, %2, %c0_i32_0 : i32
    scf.if %3 {
      %c0_i32_14 = arith.constant 0 : i32
      %c8_i32 = arith.constant 8 : i32
      %26 = arith.muli %c0_i32_14, %c8_i32 : i32
      %c0_i32_15 = arith.constant 0 : i32
      %27 = arith.addi %26, %c0_i32_15 : i32
      %c0_i32_16 = arith.constant 0 : i32
      %28 = arith.addi %c0_i32_16, %27 : i32
      %29 = arith.index_cast %28 : i32 to index
      %30 = memref.load %arg1[%29] : memref<16xi32, #tpu.memory_space<smem>>
      %c0_i32_17 = arith.constant 0 : i32
      %c0_i32_18 = arith.constant 0 : i32
      %c0_i32_19 = arith.constant 0 : i32
      %31 = tpu.memref_slice %arg3[%30, %c0_i32_19] : memref<64x128xf32, #tpu.memory_space<any>> -> memref<1x128xf32, #tpu.memory_space<any>>
      %c0_i32_20 = arith.constant 0 : i32
      %32 = tpu.memref_slice %arg6[%c0_i32_17, %27, %c0_i32_20] : memref<2x8x128xf32, #tpu.memory_space<vmem>> -> memref<1x1x128xf32, #tpu.memory_space<vmem>>
      %33 = tpu.memref_squeeze %32 : memref<1x1x128xf32, #tpu.memory_space<vmem>> -> memref<1x128xf32, #tpu.memory_space<vmem>>
      %34 = tpu.memref_slice %arg7[%c0_i32_18] : memref<2x!tpu.dma_semaphore, #tpu.memory_space<semaphore_mem>> -> memref<1x!tpu.dma_semaphore, #tpu.memory_space<semaphore_mem>>
      %35 = tpu.memref_squeeze %34 : memref<1x!tpu.dma_semaphore, #tpu.memory_space<semaphore_mem>> -> memref<!tpu.dma_semaphore, #tpu.memory_space<semaphore_mem>>
      tpu.enqueue_dma source(%31 : memref<1x128xf32, #tpu.memory_space<any>>) target(%33 : memref<1x128xf32, #tpu.memory_space<vmem>>) target_semaphore(%35 : memref<!tpu.dma_semaphore, #tpu.memory_space<semaphore_mem>>)
      %c1_i32_21 = arith.constant 1 : i32
      %36 = arith.addi %26, %c1_i32_21 : i32
      %c0_i32_22 = arith.constant 0 : i32
      %37 = arith.addi %c0_i32_22, %36 : i32
      %38 = arith.index_cast %37 : i32 to index
      %39 = memref.load %arg1[%38] : memref<16xi32, #tpu.memory_space<smem>>
      %c0_i32_23 = arith.constant 0 : i32
      %c0_i32_24 = arith.constant 0 : i32
      %c0_i32_25 = arith.constant 0 : i32
      %40 = tpu.memref_slice %arg3[%39, %c0_i32_25] : memref<64x128xf32, #tpu.memory_space<any>> -> memref<1x128xf32, #tpu.memory_space<any>>
      %c0_i32_26 = arith.constant 0 : i32
      %41 = tpu.memref_slice %arg6[%c0_i32_23, %36, %c0_i32_26] : memref<2x8x128xf32, #tpu.memory_space<vmem>> -> memref<1x1x128xf32, #tpu.memory_space<vmem>>
      %42 = tpu.memref_squeeze %41 : memref<1x1x128xf32, #tpu.memory_space<vmem>> -> memref<1x128xf32, #tpu.memory_space<vmem>>
      %43 = tpu.memref_slice %arg7[%c0_i32_24] : memref<2x!tpu.dma_semaphore, #tpu.memory_space<semaphore_mem>> -> memref<1x!tpu.dma_semaphore, #tpu.memory_space<semaphore_mem>>
      %44 = tpu.memref_squeeze %43 : memref<1x!tpu.dma_semaphore, #tpu.memory_space<semaphore_mem>> -> memref<!tpu.dma_semaphore, #tpu.memory_space<semaphore_mem>>
      tpu.enqueue_dma source(%40 : memref<1x128xf32, #tpu.memory_space<any>>) target(%42 : memref<1x128xf32, #tpu.memory_space<vmem>>) target_semaphore(%44 : memref<!tpu.dma_semaphore, #tpu.memory_space<semaphore_mem>>)
      %c2_i32_27 = arith.constant 2 : i32
      %45 = arith.addi %26, %c2_i32_27 : i32
      %c0_i32_28 = arith.constant 0 : i32
      %46 = arith.addi %c0_i32_28, %45 : i32
      %47 = arith.index_cast %46 : i32 to index
      %48 = memref.load %arg1[%47] : memref<16xi32, #tpu.memory_space<smem>>
      %c0_i32_29 = arith.constant 0 : i32
      %c0_i32_30 = arith.constant 0 : i32
      %c0_i32_31 = arith.constant 0 : i32
      %49 = tpu.memref_slice %arg3[%48, %c0_i32_31] : memref<64x128xf32, #tpu.memory_space<any>> -> memref<1x128xf32, #tpu.memory_space<any>>
      %c0_i32_32 = arith.constant 0 : i32
      %50 = tpu.memref_slice %arg6[%c0_i32_29, %45, %c0_i32_32] : memref<2x8x128xf32, #tpu.memory_space<vmem>> -> memref<1x1x128xf32, #tpu.memory_space<vmem>>
      %51 = tpu.memref_squeeze %50 : memref<1x1x128xf32, #tpu.memory_space<vmem>> -> memref<1x128xf32, #tpu.memory_space<vmem>>
      %52 = tpu.memref_slice %arg7[%c0_i32_30] : memref<2x!tpu.dma_semaphore, #tpu.memory_space<semaphore_mem>> -> memref<1x!tpu.dma_semaphore, #tpu.memory_space<semaphore_mem>>
      %53 = tpu.memref_squeeze %52 : memref<1x!tpu.dma_semaphore, #tpu.memory_space<semaphore_mem>> -> memref<!tpu.dma_semaphore, #tpu.memory_space<semaphore_mem>>
      tpu.enqueue_dma source(%49 : memref<1x128xf32, #tpu.memory_space<any>>) target(%51 : memref<1x128xf32, #tpu.memory_space<vmem>>) target_semaphore(%53 : memref<!tpu.dma_semaphore, #tpu.memory_space<semaphore_mem>>)
      %c3_i32 = arith.constant 3 : i32
      %54 = arith.addi %26, %c3_i32 : i32
      %c0_i32_33 = arith.constant 0 : i32
      %55 = arith.addi %c0_i32_33, %54 : i32
      %56 = arith.index_cast %55 : i32 to index
      %57 = memref.load %arg1[%56] : memref<16xi32, #tpu.memory_space<smem>>
      %c0_i32_34 = arith.constant 0 : i32
      %c0_i32_35 = arith.constant 0 : i32
      %c0_i32_36 = arith.constant 0 : i32
      %58 = tpu.memref_slice %arg3[%57, %c0_i32_36] : memref<64x128xf32, #tpu.memory_space<any>> -> memref<1x128xf32, #tpu.memory_space<any>>
      %c0_i32_37 = arith.constant 0 : i32
      %59 = tpu.memref_slice %arg6[%c0_i32_34, %54, %c0_i32_37] : memref<2x8x128xf32, #tpu.memory_space<vmem>> -> memref<1x1x128xf32, #tpu.memory_space<vmem>>
      %60 = tpu.memref_squeeze %59 : memref<1x1x128xf32, #tpu.memory_space<vmem>> -> memref<1x128xf32, #tpu.memory_space<vmem>>
      %61 = tpu.memref_slice %arg7[%c0_i32_35] : memref<2x!tpu.dma_semaphore, #tpu.memory_space<semaphore_mem>> -> memref<1x!tpu.dma_semaphore, #tpu.memory_space<semaphore_mem>>
      %62 = tpu.memref_squeeze %61 : memref<1x!tpu.dma_semaphore, #tpu.memory_space<semaphore_mem>> -> memref<!tpu.dma_semaphore, #tpu.memory_space<semaphore_mem>>
      tpu.enqueue_dma source(%58 : memref<1x128xf32, #tpu.memory_space<any>>) target(%60 : memref<1x128xf32, #tpu.memory_space<vmem>>) target_semaphore(%62 : memref<!tpu.dma_semaphore, #tpu.memory_space<semaphore_mem>>)
      %c4_i32 = arith.constant 4 : i32
      %63 = arith.addi %26, %c4_i32 : i32
      %c0_i32_38 = arith.constant 0 : i32
      %64 = arith.addi %c0_i32_38, %63 : i32
      %65 = arith.index_cast %64 : i32 to index
      %66 = memref.load %arg1[%65] : memref<16xi32, #tpu.memory_space<smem>>
      %c0_i32_39 = arith.constant 0 : i32
      %c0_i32_40 = arith.constant 0 : i32
      %c0_i32_41 = arith.constant 0 : i32
      %67 = tpu.memref_slice %arg3[%66, %c0_i32_41] : memref<64x128xf32, #tpu.memory_space<any>> -> memref<1x128xf32, #tpu.memory_space<any>>
      %c0_i32_42 = arith.constant 0 : i32
      %68 = tpu.memref_slice %arg6[%c0_i32_39, %63, %c0_i32_42] : memref<2x8x128xf32, #tpu.memory_space<vmem>> -> memref<1x1x128xf32, #tpu.memory_space<vmem>>
      %69 = tpu.memref_squeeze %68 : memref<1x1x128xf32, #tpu.memory_space<vmem>> -> memref<1x128xf32, #tpu.memory_space<vmem>>
      %70 = tpu.memref_slice %arg7[%c0_i32_40] : memref<2x!tpu.dma_semaphore, #tpu.memory_space<semaphore_mem>> -> memref<1x!tpu.dma_semaphore, #tpu.memory_space<semaphore_mem>>
      %71 = tpu.memref_squeeze %70 : memref<1x!tpu.dma_semaphore, #tpu.memory_space<semaphore_mem>> -> memref<!tpu.dma_semaphore, #tpu.memory_space<semaphore_mem>>
      tpu.enqueue_dma source(%67 : memref<1x128xf32, #tpu.memory_space<any>>) target(%69 : memref<1x128xf32, #tpu.memory_space<vmem>>) target_semaphore(%71 : memref<!tpu.dma_semaphore, #tpu.memory_space<semaphore_mem>>)
      %c5_i32 = arith.constant 5 : i32
      %72 = arith.addi %26, %c5_i32 : i32
      %c0_i32_43 = arith.constant 0 : i32
      %73 = arith.addi %c0_i32_43, %72 : i32
      %74 = arith.index_cast %73 : i32 to index
      %75 = memref.load %arg1[%74] : memref<16xi32, #tpu.memory_space<smem>>
      %c0_i32_44 = arith.constant 0 : i32
      %c0_i32_45 = arith.constant 0 : i32
      %c0_i32_46 = arith.constant 0 : i32
      %76 = tpu.memref_slice %arg3[%75, %c0_i32_46] : memref<64x128xf32, #tpu.memory_space<any>> -> memref<1x128xf32, #tpu.memory_space<any>>
      %c0_i32_47 = arith.constant 0 : i32
      %77 = tpu.memref_slice %arg6[%c0_i32_44, %72, %c0_i32_47] : memref<2x8x128xf32, #tpu.memory_space<vmem>> -> memref<1x1x128xf32, #tpu.memory_space<vmem>>
      %78 = tpu.memref_squeeze %77 : memref<1x1x128xf32, #tpu.memory_space<vmem>> -> memref<1x128xf32, #tpu.memory_space<vmem>>
      %79 = tpu.memref_slice %arg7[%c0_i32_45] : memref<2x!tpu.dma_semaphore, #tpu.memory_space<semaphore_mem>> -> memref<1x!tpu.dma_semaphore, #tpu.memory_space<semaphore_mem>>
      %80 = tpu.memref_squeeze %79 : memref<1x!tpu.dma_semaphore, #tpu.memory_space<semaphore_mem>> -> memref<!tpu.dma_semaphore, #tpu.memory_space<semaphore_mem>>
      tpu.enqueue_dma source(%76 : memref<1x128xf32, #tpu.memory_space<any>>) target(%78 : memref<1x128xf32, #tpu.memory_space<vmem>>) target_semaphore(%80 : memref<!tpu.dma_semaphore, #tpu.memory_space<semaphore_mem>>)
      %c6_i32 = arith.constant 6 : i32
      %81 = arith.addi %26, %c6_i32 : i32
      %c0_i32_48 = arith.constant 0 : i32
      %82 = arith.addi %c0_i32_48, %81 : i32
      %83 = arith.index_cast %82 : i32 to index
      %84 = memref.load %arg1[%83] : memref<16xi32, #tpu.memory_space<smem>>
      %c0_i32_49 = arith.constant 0 : i32
      %c0_i32_50 = arith.constant 0 : i32
      %c0_i32_51 = arith.constant 0 : i32
      %85 = tpu.memref_slice %arg3[%84, %c0_i32_51] : memref<64x128xf32, #tpu.memory_space<any>> -> memref<1x128xf32, #tpu.memory_space<any>>
      %c0_i32_52 = arith.constant 0 : i32
      %86 = tpu.memref_slice %arg6[%c0_i32_49, %81, %c0_i32_52] : memref<2x8x128xf32, #tpu.memory_space<vmem>> -> memref<1x1x128xf32, #tpu.memory_space<vmem>>
      %87 = tpu.memref_squeeze %86 : memref<1x1x128xf32, #tpu.memory_space<vmem>> -> memref<1x128xf32, #tpu.memory_space<vmem>>
      %88 = tpu.memref_slice %arg7[%c0_i32_50] : memref<2x!tpu.dma_semaphore, #tpu.memory_space<semaphore_mem>> -> memref<1x!tpu.dma_semaphore, #tpu.memory_space<semaphore_mem>>
      %89 = tpu.memref_squeeze %88 : memref<1x!tpu.dma_semaphore, #tpu.memory_space<semaphore_mem>> -> memref<!tpu.dma_semaphore, #tpu.memory_space<semaphore_mem>>
      tpu.enqueue_dma source(%85 : memref<1x128xf32, #tpu.memory_space<any>>) target(%87 : memref<1x128xf32, #tpu.memory_space<vmem>>) target_semaphore(%89 : memref<!tpu.dma_semaphore, #tpu.memory_space<semaphore_mem>>)
      %c7_i32 = arith.constant 7 : i32
      %90 = arith.addi %26, %c7_i32 : i32
      %c0_i32_53 = arith.constant 0 : i32
      %91 = arith.addi %c0_i32_53, %90 : i32
      %92 = arith.index_cast %91 : i32 to index
      %93 = memref.load %arg1[%92] : memref<16xi32, #tpu.memory_space<smem>>
      %c0_i32_54 = arith.constant 0 : i32
      %c0_i32_55 = arith.constant 0 : i32
      %c0_i32_56 = arith.constant 0 : i32
      %94 = tpu.memref_slice %arg3[%93, %c0_i32_56] : memref<64x128xf32, #tpu.memory_space<any>> -> memref<1x128xf32, #tpu.memory_space<any>>
      %c0_i32_57 = arith.constant 0 : i32
      %95 = tpu.memref_slice %arg6[%c0_i32_54, %90, %c0_i32_57] : memref<2x8x128xf32, #tpu.memory_space<vmem>> -> memref<1x1x128xf32, #tpu.memory_space<vmem>>
      %96 = tpu.memref_squeeze %95 : memref<1x1x128xf32, #tpu.memory_space<vmem>> -> memref<1x128xf32, #tpu.memory_space<vmem>>
      %97 = tpu.memref_slice %arg7[%c0_i32_55] : memref<2x!tpu.dma_semaphore, #tpu.memory_space<semaphore_mem>> -> memref<1x!tpu.dma_semaphore, #tpu.memory_space<semaphore_mem>>
      %98 = tpu.memref_squeeze %97 : memref<1x!tpu.dma_semaphore, #tpu.memory_space<semaphore_mem>> -> memref<!tpu.dma_semaphore, #tpu.memory_space<semaphore_mem>>
      tpu.enqueue_dma source(%94 : memref<1x128xf32, #tpu.memory_space<any>>) target(%96 : memref<1x128xf32, #tpu.memory_space<vmem>>) target_semaphore(%98 : memref<!tpu.dma_semaphore, #tpu.memory_space<semaphore_mem>>)
      %c1_i32_58 = arith.constant 1 : i32
    } else {
    }
    %c1_i32_1 = arith.constant 1 : i32
    %4 = arith.addi %arg0, %c1_i32_1 : i32
    %c2_i32 = arith.constant 2 : i32
    %5 = arith.cmpi slt, %4, %c2_i32 : i32
    %6 = arith.extui %5 : i1 to i32
    %c0_i32_2 = arith.constant 0 : i32
    %7 = arith.cmpi ne, %6, %c0_i32_2 : i32
    scf.if %7 {
      %c1_i32_14 = arith.constant 1 : i32
      %26 = arith.addi %arg0, %c1_i32_14 : i32
      %c1_i32_15 = arith.constant 1 : i32
      %27 = arith.subi %c1_i32_15, %0 : i32
      %c8_i32 = arith.constant 8 : i32
      %28 = arith.muli %26, %c8_i32 : i32
      %c0_i32_16 = arith.constant 0 : i32
      %c8_i32_17 = arith.constant 8 : i32
      %29 = arith.muli %c0_i32_16, %c8_i32_17 : i32
      %c0_i32_18 = arith.constant 0 : i32
      %30 = arith.addi %29, %c0_i32_18 : i32
      %31 = arith.addi %28, %30 : i32
      %32 = arith.index_cast %31 : i32 to index
      %33 = memref.load %arg1[%32] : memref<16xi32, #tpu.memory_space<smem>>
      %c0_i32_19 = arith.constant 0 : i32
      %34 = tpu.memref_slice %arg3[%33, %c0_i32_19] : memref<64x128xf32, #tpu.memory_space<any>> -> memref<1x128xf32, #tpu.memory_space<any>>
      %c0_i32_20 = arith.constant 0 : i32
      %35 = tpu.memref_slice %arg6[%27, %30, %c0_i32_20] : memref<2x8x128xf32, #tpu.memory_space<vmem>> -> memref<1x1x128xf32, #tpu.memory_space<vmem>>
      %36 = tpu.memref_squeeze %35 : memref<1x1x128xf32, #tpu.memory_space<vmem>> -> memref<1x128xf32, #tpu.memory_space<vmem>>
      %37 = tpu.memref_slice %arg7[%27] : memref<2x!tpu.dma_semaphore, #tpu.memory_space<semaphore_mem>> -> memref<1x!tpu.dma_semaphore, #tpu.memory_space<semaphore_mem>>
      %38 = tpu.memref_squeeze %37 : memref<1x!tpu.dma_semaphore, #tpu.memory_space<semaphore_mem>> -> memref<!tpu.dma_semaphore, #tpu.memory_space<semaphore_mem>>
      tpu.enqueue_dma source(%34 : memref<1x128xf32, #tpu.memory_space<any>>) target(%36 : memref<1x128xf32, #tpu.memory_space<vmem>>) target_semaphore(%38 : memref<!tpu.dma_semaphore, #tpu.memory_space<semaphore_mem>>)
      %c1_i32_21 = arith.constant 1 : i32
      %39 = arith.addi %29, %c1_i32_21 : i32
      %40 = arith.addi %28, %39 : i32
      %41 = arith.index_cast %40 : i32 to index
      %42 = memref.load %arg1[%41] : memref<16xi32, #tpu.memory_space<smem>>
      %c0_i32_22 = arith.constant 0 : i32
      %43 = tpu.memref_slice %arg3[%42, %c0_i32_22] : memref<64x128xf32, #tpu.memory_space<any>> -> memref<1x128xf32, #tpu.memory_space<any>>
      %c0_i32_23 = arith.constant 0 : i32
      %44 = tpu.memref_slice %arg6[%27, %39, %c0_i32_23] : memref<2x8x128xf32, #tpu.memory_space<vmem>> -> memref<1x1x128xf32, #tpu.memory_space<vmem>>
      %45 = tpu.memref_squeeze %44 : memref<1x1x128xf32, #tpu.memory_space<vmem>> -> memref<1x128xf32, #tpu.memory_space<vmem>>
      %46 = tpu.memref_slice %arg7[%27] : memref<2x!tpu.dma_semaphore, #tpu.memory_space<semaphore_mem>> -> memref<1x!tpu.dma_semaphore, #tpu.memory_space<semaphore_mem>>
      %47 = tpu.memref_squeeze %46 : memref<1x!tpu.dma_semaphore, #tpu.memory_space<semaphore_mem>> -> memref<!tpu.dma_semaphore, #tpu.memory_space<semaphore_mem>>
      tpu.enqueue_dma source(%43 : memref<1x128xf32, #tpu.memory_space<any>>) target(%45 : memref<1x128xf32, #tpu.memory_space<vmem>>) target_semaphore(%47 : memref<!tpu.dma_semaphore, #tpu.memory_space<semaphore_mem>>)
      %c2_i32_24 = arith.constant 2 : i32
      %48 = arith.addi %29, %c2_i32_24 : i32
      %49 = arith.addi %28, %48 : i32
      %50 = arith.index_cast %49 : i32 to index
      %51 = memref.load %arg1[%50] : memref<16xi32, #tpu.memory_space<smem>>
      %c0_i32_25 = arith.constant 0 : i32
      %52 = tpu.memref_slice %arg3[%51, %c0_i32_25] : memref<64x128xf32, #tpu.memory_space<any>> -> memref<1x128xf32, #tpu.memory_space<any>>
      %c0_i32_26 = arith.constant 0 : i32
      %53 = tpu.memref_slice %arg6[%27, %48, %c0_i32_26] : memref<2x8x128xf32, #tpu.memory_space<vmem>> -> memref<1x1x128xf32, #tpu.memory_space<vmem>>
      %54 = tpu.memref_squeeze %53 : memref<1x1x128xf32, #tpu.memory_space<vmem>> -> memref<1x128xf32, #tpu.memory_space<vmem>>
      %55 = tpu.memref_slice %arg7[%27] : memref<2x!tpu.dma_semaphore, #tpu.memory_space<semaphore_mem>> -> memref<1x!tpu.dma_semaphore, #tpu.memory_space<semaphore_mem>>
      %56 = tpu.memref_squeeze %55 : memref<1x!tpu.dma_semaphore, #tpu.memory_space<semaphore_mem>> -> memref<!tpu.dma_semaphore, #tpu.memory_space<semaphore_mem>>
      tpu.enqueue_dma source(%52 : memref<1x128xf32, #tpu.memory_space<any>>) target(%54 : memref<1x128xf32, #tpu.memory_space<vmem>>) target_semaphore(%56 : memref<!tpu.dma_semaphore, #tpu.memory_space<semaphore_mem>>)
      %c3_i32 = arith.constant 3 : i32
      %57 = arith.addi %29, %c3_i32 : i32
      %58 = arith.addi %28, %57 : i32
      %59 = arith.index_cast %58 : i32 to index
      %60 = memref.load %arg1[%59] : memref<16xi32, #tpu.memory_space<smem>>
      %c0_i32_27 = arith.constant 0 : i32
      %61 = tpu.memref_slice %arg3[%60, %c0_i32_27] : memref<64x128xf32, #tpu.memory_space<any>> -> memref<1x128xf32, #tpu.memory_space<any>>
      %c0_i32_28 = arith.constant 0 : i32
      %62 = tpu.memref_slice %arg6[%27, %57, %c0_i32_28] : memref<2x8x128xf32, #tpu.memory_space<vmem>> -> memref<1x1x128xf32, #tpu.memory_space<vmem>>
      %63 = tpu.memref_squeeze %62 : memref<1x1x128xf32, #tpu.memory_space<vmem>> -> memref<1x128xf32, #tpu.memory_space<vmem>>
      %64 = tpu.memref_slice %arg7[%27] : memref<2x!tpu.dma_semaphore, #tpu.memory_space<semaphore_mem>> -> memref<1x!tpu.dma_semaphore, #tpu.memory_space<semaphore_mem>>
      %65 = tpu.memref_squeeze %64 : memref<1x!tpu.dma_semaphore, #tpu.memory_space<semaphore_mem>> -> memref<!tpu.dma_semaphore, #tpu.memory_space<semaphore_mem>>
      tpu.enqueue_dma source(%61 : memref<1x128xf32, #tpu.memory_space<any>>) target(%63 : memref<1x128xf32, #tpu.memory_space<vmem>>) target_semaphore(%65 : memref<!tpu.dma_semaphore, #tpu.memory_space<semaphore_mem>>)
      %c4_i32 = arith.constant 4 : i32
      %66 = arith.addi %29, %c4_i32 : i32
      %67 = arith.addi %28, %66 : i32
      %68 = arith.index_cast %67 : i32 to index
      %69 = memref.load %arg1[%68] : memref<16xi32, #tpu.memory_space<smem>>
      %c0_i32_29 = arith.constant 0 : i32
      %70 = tpu.memref_slice %arg3[%69, %c0_i32_29] : memref<64x128xf32, #tpu.memory_space<any>> -> memref<1x128xf32, #tpu.memory_space<any>>
      %c0_i32_30 = arith.constant 0 : i32
      %71 = tpu.memref_slice %arg6[%27, %66, %c0_i32_30] : memref<2x8x128xf32, #tpu.memory_space<vmem>> -> memref<1x1x128xf32, #tpu.memory_space<vmem>>
      %72 = tpu.memref_squeeze %71 : memref<1x1x128xf32, #tpu.memory_space<vmem>> -> memref<1x128xf32, #tpu.memory_space<vmem>>
      %73 = tpu.memref_slice %arg7[%27] : memref<2x!tpu.dma_semaphore, #tpu.memory_space<semaphore_mem>> -> memref<1x!tpu.dma_semaphore, #tpu.memory_space<semaphore_mem>>
      %74 = tpu.memref_squeeze %73 : memref<1x!tpu.dma_semaphore, #tpu.memory_space<semaphore_mem>> -> memref<!tpu.dma_semaphore, #tpu.memory_space<semaphore_mem>>
      tpu.enqueue_dma source(%70 : memref<1x128xf32, #tpu.memory_space<any>>) target(%72 : memref<1x128xf32, #tpu.memory_space<vmem>>) target_semaphore(%74 : memref<!tpu.dma_semaphore, #tpu.memory_space<semaphore_mem>>)
      %c5_i32 = arith.constant 5 : i32
      %75 = arith.addi %29, %c5_i32 : i32
      %76 = arith.addi %28, %75 : i32
      %77 = arith.index_cast %76 : i32 to index
      %78 = memref.load %arg1[%77] : memref<16xi32, #tpu.memory_space<smem>>
      %c0_i32_31 = arith.constant 0 : i32
      %79 = tpu.memref_slice %arg3[%78, %c0_i32_31] : memref<64x128xf32, #tpu.memory_space<any>> -> memref<1x128xf32, #tpu.memory_space<any>>
      %c0_i32_32 = arith.constant 0 : i32
      %80 = tpu.memref_slice %arg6[%27, %75, %c0_i32_32] : memref<2x8x128xf32, #tpu.memory_space<vmem>> -> memref<1x1x128xf32, #tpu.memory_space<vmem>>
      %81 = tpu.memref_squeeze %80 : memref<1x1x128xf32, #tpu.memory_space<vmem>> -> memref<1x128xf32, #tpu.memory_space<vmem>>
      %82 = tpu.memref_slice %arg7[%27] : memref<2x!tpu.dma_semaphore, #tpu.memory_space<semaphore_mem>> -> memref<1x!tpu.dma_semaphore, #tpu.memory_space<semaphore_mem>>
      %83 = tpu.memref_squeeze %82 : memref<1x!tpu.dma_semaphore, #tpu.memory_space<semaphore_mem>> -> memref<!tpu.dma_semaphore, #tpu.memory_space<semaphore_mem>>
      tpu.enqueue_dma source(%79 : memref<1x128xf32, #tpu.memory_space<any>>) target(%81 : memref<1x128xf32, #tpu.memory_space<vmem>>) target_semaphore(%83 : memref<!tpu.dma_semaphore, #tpu.memory_space<semaphore_mem>>)
      %c6_i32 = arith.constant 6 : i32
      %84 = arith.addi %29, %c6_i32 : i32
      %85 = arith.addi %28, %84 : i32
      %86 = arith.index_cast %85 : i32 to index
      %87 = memref.load %arg1[%86] : memref<16xi32, #tpu.memory_space<smem>>
      %c0_i32_33 = arith.constant 0 : i32
      %88 = tpu.memref_slice %arg3[%87, %c0_i32_33] : memref<64x128xf32, #tpu.memory_space<any>> -> memref<1x128xf32, #tpu.memory_space<any>>
      %c0_i32_34 = arith.constant 0 : i32
      %89 = tpu.memref_slice %arg6[%27, %84, %c0_i32_34] : memref<2x8x128xf32, #tpu.memory_space<vmem>> -> memref<1x1x128xf32, #tpu.memory_space<vmem>>
      %90 = tpu.memref_squeeze %89 : memref<1x1x128xf32, #tpu.memory_space<vmem>> -> memref<1x128xf32, #tpu.memory_space<vmem>>
      %91 = tpu.memref_slice %arg7[%27] : memref<2x!tpu.dma_semaphore, #tpu.memory_space<semaphore_mem>> -> memref<1x!tpu.dma_semaphore, #tpu.memory_space<semaphore_mem>>
      %92 = tpu.memref_squeeze %91 : memref<1x!tpu.dma_semaphore, #tpu.memory_space<semaphore_mem>> -> memref<!tpu.dma_semaphore, #tpu.memory_space<semaphore_mem>>
      tpu.enqueue_dma source(%88 : memref<1x128xf32, #tpu.memory_space<any>>) target(%90 : memref<1x128xf32, #tpu.memory_space<vmem>>) target_semaphore(%92 : memref<!tpu.dma_semaphore, #tpu.memory_space<semaphore_mem>>)
      %c7_i32 = arith.constant 7 : i32
      %93 = arith.addi %29, %c7_i32 : i32
      %94 = arith.addi %28, %93 : i32
      %95 = arith.index_cast %94 : i32 to index
      %96 = memref.load %arg1[%95] : memref<16xi32, #tpu.memory_space<smem>>
      %c0_i32_35 = arith.constant 0 : i32
      %97 = tpu.memref_slice %arg3[%96, %c0_i32_35] : memref<64x128xf32, #tpu.memory_space<any>> -> memref<1x128xf32, #tpu.memory_space<any>>
      %c0_i32_36 = arith.constant 0 : i32
      %98 = tpu.memref_slice %arg6[%27, %93, %c0_i32_36] : memref<2x8x128xf32, #tpu.memory_space<vmem>> -> memref<1x1x128xf32, #tpu.memory_space<vmem>>
      %99 = tpu.memref_squeeze %98 : memref<1x1x128xf32, #tpu.memory_space<vmem>> -> memref<1x128xf32, #tpu.memory_space<vmem>>
      %100 = tpu.memref_slice %arg7[%27] : memref<2x!tpu.dma_semaphore, #tpu.memory_space<semaphore_mem>> -> memref<1x!tpu.dma_semaphore, #tpu.memory_space<semaphore_mem>>
      %101 = tpu.memref_squeeze %100 : memref<1x!tpu.dma_semaphore, #tpu.memory_space<semaphore_mem>> -> memref<!tpu.dma_semaphore, #tpu.memory_space<semaphore_mem>>
      tpu.enqueue_dma source(%97 : memref<1x128xf32, #tpu.memory_space<any>>) target(%99 : memref<1x128xf32, #tpu.memory_space<vmem>>) target_semaphore(%101 : memref<!tpu.dma_semaphore, #tpu.memory_space<semaphore_mem>>)
      %c1_i32_37 = arith.constant 1 : i32
    } else {
    }
    %c0 = arith.constant 0 : index
    %c0_3 = arith.constant 0 : index
    %8 = vector.load %arg2[%c0, %c0_3] : memref<8x1xi32, #tpu.memory_space<vmem>>, vector<8x1xi32>
    %9 = tpu.iota {dimensions = array<i32: 1>} : vector<8x16xi32>
    %10 = vector.broadcast %8 : vector<8x1xi32> to vector<8x16xi32>
    %11 = arith.cmpi eq, %9, %10 : vector<8x16xi32>
    %12 = arith.extui %11 : vector<8x16xi1> to vector<8x16xi32>
    %13 = arith.sitofp %12 : vector<8x16xi32> to vector<8x16xf32>
    %c0_4 = arith.constant 0 : index
    %c0_5 = arith.constant 0 : index
    %14 = vector.load %arg4[%c0_4, %c0_5] : memref<16x128xf32, #tpu.memory_space<vmem>>, vector<16x128xf32>
    %cst = arith.constant dense<0.000000e+00> : vector<8x128xf32>
    %15 = tpu.matmul %13, %14, %cst {dimension_numbers = #tpu.dot_dimension_numbers<[1], [0], [0], [1], [0, 0, 1, 1], [], []>} : vector<8x16xf32>, vector<16x128xf32>, vector<8x128xf32> -> vector<8x128xf32>
    %c0_i32_6 = arith.constant 0 : i32
    %c0_i32_7 = arith.constant 0 : i32
    %16 = tpu.memref_slice %arg3[%c0_i32_6, %c0_i32_7] : memref<64x128xf32, #tpu.memory_space<any>> -> memref<8x128xf32, #tpu.memory_space<any>>
    %c0_i32_8 = arith.constant 0 : i32
    %c0_i32_9 = arith.constant 0 : i32
    %17 = tpu.memref_slice %arg6[%0, %c0_i32_8, %c0_i32_9] : memref<2x8x128xf32, #tpu.memory_space<vmem>> -> memref<1x8x128xf32, #tpu.memory_space<vmem>>
    %18 = tpu.memref_squeeze %17 : memref<1x8x128xf32, #tpu.memory_space<vmem>> -> memref<8x128xf32, #tpu.memory_space<vmem>>
    %19 = tpu.memref_slice %arg7[%0] : memref<2x!tpu.dma_semaphore, #tpu.memory_space<semaphore_mem>> -> memref<1x!tpu.dma_semaphore, #tpu.memory_space<semaphore_mem>>
    %20 = tpu.memref_squeeze %19 : memref<1x!tpu.dma_semaphore, #tpu.memory_space<semaphore_mem>> -> memref<!tpu.dma_semaphore, #tpu.memory_space<semaphore_mem>>
    tpu.wait_dma2 semaphore(%20 : memref<!tpu.dma_semaphore, #tpu.memory_space<semaphore_mem>>) src(%16 : memref<8x128xf32, #tpu.memory_space<any>>) dst(%18 : memref<8x128xf32, #tpu.memory_space<vmem>>)
    %21 = arith.index_cast %0 : i32 to index
    %c0_10 = arith.constant 0 : index
    %c0_11 = arith.constant 0 : index
    %22 = vector.load %arg6[%21, %c0_10, %c0_11] : memref<2x8x128xf32, #tpu.memory_space<vmem>>, vector<1x8x128xf32>
    %23 = vector.shape_cast %22 : vector<1x8x128xf32> to vector<8x128xf32>
    %24 = arith.addf %23, %15 : vector<8x128xf32>
    %c0_12 = arith.constant 0 : index
    %c0_13 = arith.constant 0 : index
    %25 = vector.load %arg5[%c0_12, %c0_13] : memref<8x128xf32, #tpu.memory_space<vmem>>, vector<8x128xf32>
    tpu.vector_store %arg5[%c0_12, %c0_13], %24 {strides = array<i32>} : memref<8x128xf32, #tpu.memory_space<vmem>>, vector<8x128xf32>,
    return
  }
  func.func @transform_0(%arg0: i32, %arg1: memref<16xi32, #tpu.memory_space<smem>>) -> (i32, i32) {
    %c0_i32 = arith.constant 0 : i32
    %c0_i32_0 = arith.constant 0 : i32
    return %arg0, %c0_i32 : i32, i32
  }
  func.func @transform_2(%arg0: i32, %arg1: memref<16xi32, #tpu.memory_space<smem>>) -> (i32, i32) {
    %c0_i32 = arith.constant 0 : i32
    %c0_i32_0 = arith.constant 0 : i32
    %c0_i32_1 = arith.constant 0 : i32
    return %c0_i32, %c0_i32_0 : i32, i32
  }
  func.func @transform_3(%arg0: i32, %arg1: memref<16xi32, #tpu.memory_space<smem>>) -> (i32, i32) {
    %c0_i32 = arith.constant 0 : i32
    %c0_i32_0 = arith.constant 0 : i32
    return %arg0, %c0_i32 : i32, i32
  }
}

</mosaic_0001>

<llo_original>
// kernel: tpu_custom_call.1
$region0: #{tpu_custom_call.1}
  #allocation0 [shape = 'u32[]', space=smem, size = 0x4, offset = 0x4, fixed_abs, tag = 'smem constant byte address 0x4 - core index']
  #allocation1 [shape = 'u32[72,128]{1,0:T(1,128)}', space=vmem, size = 0x9000, scoped, tag = 'internal scratch']
  #allocation2 [shape = 'f32[2,8,128]{2,1,0:T(8,128)}', space=vmem, size = 0x2000, scoped, tag = 'scratch operand']
  #allocation3 [shape = 's32[2]{0}', space=sflag, size = 0x8, scoped, tag = 'scratch operand']
  #allocation4 [shape = 's32[1]{0}', space=sflag, size = 0x4, scoped, tag = 'scoped memory for tpu_custom_call.1']
  #allocation5 [shape = 'u8[512]{0}', space=smem, size = 0x200, scoped, tag = 'prefetched SMEM operand 0']
  #allocation8 [shape = 's32[]', space=sflag, size = 0x4, offset = 0, fixed_abs, tag = 'sflag constant byte address 0x0 - dummy sync flag']
  #allocation9 [shape = 's32[]', space=sflag, size = 0x4, offset = 0, fixed_abs, tag = 'sflag constant byte address 0x0 - dummy sync flag']
  #allocation10 [shape = 'u32[]', space=smem, size = 0x4, offset = 0x44, fixed_abs, tag = 'smem constant byte address 0x44 - assertion arg 0']
  #allocation11 [shape = 'u32[]', space=smem, size = 0x4, offset = 0x48, fixed_abs, tag = 'smem constant byte address 0x48 - assertion arg 1']
  #allocation12 [shape = 's32[]', space=sflag, size = 0x4, offset = 0, fixed_abs, tag = 'sflag constant byte address 0x0 - dummy sync flag']
  #allocation13 [shape = 's32[]', space=sflag, size = 0x4, offset = 0, fixed_abs, tag = 'sflag constant byte address 0x0 - dummy sync flag']
  #allocation14 [shape = 's32[]', space=sflag, size = 0x4, offset = 0, fixed_abs, tag = 'sflag constant byte address 0x0 - dummy sync flag']
  #allocation15 [shape = 's32[]', space=sflag, size = 0x4, offset = 0, fixed_abs, tag = 'sflag constant byte address 0x0 - dummy sync flag']
  #allocation16 [shape = 's32[]', space=sflag, size = 0x4, offset = 0, fixed_abs, tag = 'sflag constant byte address 0x0 - dummy sync flag']
  #allocation17 [shape = 's32[]', space=sflag, size = 0x4, offset = 0, fixed_abs, tag = 'sflag constant byte address 0x0 - dummy sync flag']
  #allocation18 [shape = 's32[]', space=sflag, size = 0x4, offset = 0, fixed_abs, tag = 'sflag constant byte address 0x0 - dummy sync flag']
  #allocation19 [shape = 's32[]', space=sflag, size = 0x4, offset = 0, fixed_abs, tag = 'sflag constant byte address 0x0 - dummy sync flag']
  #allocation20 [shape = 's32[]', space=sflag, size = 0x4, offset = 0, fixed_abs, tag = 'sflag constant byte address 0x0 - dummy sync flag']
  #allocation21 [shape = 's32[]', space=sflag, size = 0x4, offset = 0, fixed_abs, tag = 'sflag constant byte address 0x0 - dummy sync flag']
  #allocation22 [shape = 's32[]', space=sflag, size = 0x4, offset = 0, fixed_abs, tag = 'sflag constant byte address 0x0 - dummy sync flag']
  #allocation23 [shape = 's32[]', space=sflag, size = 0x4, offset = 0, fixed_abs, tag = 'sflag constant byte address 0x0 - dummy sync flag']
  #allocation24 [shape = 's32[]', space=sflag, size = 0x4, offset = 0, fixed_abs, tag = 'sflag constant byte address 0x0 - dummy sync flag']
  #allocation25 [shape = 's32[]', space=sflag, size = 0x4, offset = 0, fixed_abs, tag = 'sflag constant byte address 0x0 - dummy sync flag']
  #allocation26 [shape = 's32[]', space=sflag, size = 0x4, offset = 0, fixed_abs, tag = 'sflag constant byte address 0x0 - dummy sync flag']
  #allocation27 [shape = 's32[]', space=sflag, size = 0x4, offset = 0, fixed_abs, tag = 'sflag constant byte address 0x0 - dummy sync flag']
  #allocation28 [shape = 's32[]', space=sflag, size = 0x4, offset = 0, fixed_abs, tag = 'sflag constant byte address 0x0 - dummy sync flag']
  #allocation29 [shape = 's32[]', space=sflag, size = 0x4, offset = 0, fixed_abs, tag = 'sflag constant byte address 0x0 - dummy sync flag']
  #allocation30 [shape = 's32[]', space=sflag, size = 0x4, offset = 0, fixed_abs, tag = 'sflag constant byte address 0x0 - dummy sync flag']
  #allocation31 [shape = 's32[]', space=sflag, size = 0x4, offset = 0, fixed_abs, tag = 'sflag constant byte address 0x0 - dummy sync flag']
  #allocation32 [shape = 's32[]', space=sflag, size = 0x4, offset = 0, fixed_abs, tag = 'sflag constant byte address 0x0 - dummy sync flag']
  #allocation33 [shape = 's32[]', space=sflag, size = 0x4, offset = 0, fixed_abs, tag = 'sflag constant byte address 0x0 - dummy sync flag']
  #allocation34 [shape = 's32[]', space=sflag, size = 0x4, offset = 0, fixed_abs, tag = 'sflag constant byte address 0x0 - dummy sync flag']
  #allocation35 [shape = 's32[]', space=sflag, size = 0x4, offset = 0, fixed_abs, tag = 'sflag constant byte address 0x0 - dummy sync flag']
  #allocation36 [shape = 's32[]', space=sflag, size = 0x4, offset = 0, fixed_abs, tag = 'sflag constant byte address 0x0 - dummy sync flag']
  #allocation37 [shape = 's32[]', space=sflag, size = 0x4, offset = 0, fixed_abs, tag = 'sflag constant byte address 0x0 - dummy sync flag']
  #allocation38 [shape = 's32[]', space=sflag, size = 0x4, offset = 0, fixed_abs, tag = 'sflag constant byte address 0x0 - dummy sync flag']
  #allocation39 [shape = 's32[]', space=sflag, size = 0x4, offset = 0, fixed_abs, tag = 'sflag constant byte address 0x0 - dummy sync flag']
  #allocation40 [shape = 's32[]', space=sflag, size = 0x4, offset = 0, fixed_abs, tag = 'sflag constant byte address 0x0 - dummy sync flag']
  #allocation41 [shape = 's32[]', space=sflag, size = 0x4, offset = 0, fixed_abs, tag = 'sflag constant byte address 0x0 - dummy sync flag']
  %s0 = inlined_call_operand.vmem [shape: s32[16], index: 0, kind: input, shape index: {}]
  %s1 = inlined_call_operand.vmem [shape: s32[16,1], index: 1, kind: input, shape index: {}]
  %s2 = inlined_call_operand.hbm [shape: f32[64,128], index: 2, kind: input, shape index: {}]
  %s3 = inlined_call_operand.vmem [shape: f32[16,128], index: 3, kind: input, shape index: {}]
  %s4 = inlined_call_operand.hbm [shape: f32[16,128], index: 4, kind: output, shape index: {}]
  %s5 = sld [smem:[#allocation0]]
  $region113: #{tpu_custom_call.1} parent=0
    _
  %s7 = ssub.s32 1, %s5
  %s8 = scalar_select 0, %s7, %s5
  %s10 = sshll.u32 %s0, 4
  %s11 = int_to_ptr.vmem [resolvable:$true] %s10
  %13 = dma.vmem_to_smem %s11, 16, [#allocation5], [#allocation4]
  %15 = dma.done [#allocation4], 16
  %16 = sfence
  $region1: #{tpu_custom_call.1} parent=0
    #allocation6 [shape = 'u8[8192]{0}', space=vmem, size = 0x2000, scoped, tag = 'output window, operand 0']
    #allocation7 [shape = 's32[2]{0}', space=sflag, size = 0x8, scoped, tag = 'scoped memory for tpu_custom_call.1']
    %17 = vsyncpa [#allocation7], 0
    %s18 = scalar_lea.sflag [#allocation7], 1
    %19 = vsyncpa %s18, 0
    loop: start=0, step=1, limit=4
    $region2: #{tpu_custom_call.1} parent=1 // loop_pre_header
      _
    $region3: #{tpu_custom_call.1} parent=1 // loop_header
      %s21 = sphi 0, %s25
      %p22 = scmp.ge.s32.totalorder %s21, 4
      %s31 = sphi 0, %s33
      %s34 = sphi 0, %s31
      %s35 = sphi 0, %s34
      %s51 = sphi 0, %s35
      %s55 = sphi 0, %s55
      %s57 = sphi 0, %s55
      %s58 = sphi 0, %s57
      %s72 = sphi 0, %s58
      %s78 = sphi 0, %s80
      %s81 = sphi 0, %s78
      %s82 = sphi 0, %s81
      %s98 = sphi 0, %s82
    $region4: #{tpu_custom_call.1} parent=1 // loop_header_branch
      %24 = sbr.rel (%p22) target = $region8
    $region5: #{tpu_custom_call.1} parent=1 // loop_body
      %s26 = ssub.s32 %s21, 1
      %s27 = ssub.s32 %s21, 2
      %s28 = sadd.s32 %s21, 1
      %s29 = ssub.s32 %s21, %s28
      %p30 = scmp.eq.s32.totalorder %s29, 0
      %s32 = sadd.s32 %s31, 1
      %s33 = scalar_select %p30, %s31, %s32
      %p36 = pneg %p30
      %p37 = scmp.eq.s32.totalorder %s21, 1
      %p38 = por %p36, %p37
      %p39 = scmp.ne.s32.totalorder %s31, %s34
      %p40 = scmp.eq.s32.totalorder %s21, 0
      %p41 = por %p39, %p40
      %p42 = scmp.ne.s32.totalorder %s31, %s34
      %p43 = scmp.eq.s32.totalorder %s26, 1
      %p44 = por %p42, %p43
      %p45 = scmp.ne.s32.totalorder %s34, %s35
      %p46 = scmp.eq.s32.totalorder %s26, 0
      %p47 = por %p45, %p46
      %p48 = scmp.ne.s32.totalorder %s34, %s35
      %p49 = scmp.eq.s32.totalorder %s27, 1
      %p50 = por %p48, %p49
      %p52 = scmp.ne.s32.totalorder %s35, %s51
      %p53 = scmp.eq.s32.totalorder %s27, 0
      %p54 = por %p52, %p53
      %s56 = sadd.s32 %s55, 1
      %p59 = scmp.eq.s32.totalorder %s21, 1
      %p60 = scmp.ne.s32.totalorder %s55, %s57
      %p61 = scmp.eq.s32.totalorder %s21, 0
      %p62 = por %p60, %p61
      %p63 = scmp.ne.s32.totalorder %s55, %s57
      %p64 = scmp.eq.s32.totalorder %s26, 1
      %p65 = por %p63, %p64
      %p66 = scmp.ne.s32.totalorder %s57, %s58
      %p67 = scmp.eq.s32.totalorder %s26, 0
      %p68 = por %p66, %p67
      %p69 = scmp.ne.s32.totalorder %s57, %s58
      %p70 = scmp.eq.s32.totalorder %s27, 1
      %p71 = por %p69, %p70
      %p73 = scmp.ne.s32.totalorder %s58, %s72
      %p74 = scmp.eq.s32.totalorder %s27, 0
      %p75 = por %p73, %p74
      %s76 = ssub.s32 %s21, %s28
      %p77 = scmp.eq.s32.totalorder %s76, 0
      %s79 = sadd.s32 %s78, 1
      %s80 = scalar_select %p77, %s78, %s79
      %p83 = pneg %p77
      %p84 = scmp.eq.s32.totalorder %s21, 1
      %p85 = por %p83, %p84
      %p86 = scmp.ne.s32.totalorder %s78, %s81
      %p87 = scmp.eq.s32.totalorder %s21, 0
      %p88 = por %p86, %p87
      %p89 = scmp.ne.s32.totalorder %s78, %s81
      %p90 = scmp.eq.s32.totalorder %s26, 1
      %p91 = por %p89, %p90
      %p92 = scmp.ne.s32.totalorder %s81, %s82
      %p93 = scmp.eq.s32.totalorder %s26, 0
      %p94 = por %p92, %p93
      %p95 = scmp.ne.s32.totalorder %s81, %s82
      %p96 = scmp.eq.s32.totalorder %s27, 1
      %p97 = por %p95, %p96
      %p99 = scmp.ne.s32.totalorder %s82, %s98
      %p100 = scmp.eq.s32.totalorder %s27, 0
      %p101 = por %p99, %p100
      %p102 = scmp.le.s32.totalorder 1, %s21
      %p103 = scmp.lt.s32.totalorder %s21, 3
      %p104 = pnand %p102, %p103
      %p105 = pneg %p104
      // Predicated region
      $region9: #{tpu_custom_call.1} parent=5 // pred_check
        _
      $region10: #{tpu_custom_call.1} parent=5 // pred_check_branch
        %107 = sbr.rel (%p104) target = $region12
      $region11: #{tpu_custom_call.1} parent=5 // pred_region
        %s108 = ssub.s32 %s21, 1
        // Predicated region
        $region13: #{tpu_custom_call.1} parent=11 // pred_check
          %p109 = pneg %p68
        $region14: #{tpu_custom_call.1} parent=11 // pred_check_branch
          %111 = sbr.rel (%p109) target = $region16
        $region15: #{tpu_custom_call.1} parent=11 // pred_region
          _
        $region16: #{tpu_custom_call.1} parent=11 // pred_fallthru
          _
      $region12: #{tpu_custom_call.1} parent=5 // pred_fallthru
        _
      %p112 = scmp.lt.s32.totalorder %s21, 2
      // Predicated region
      $region17: #{tpu_custom_call.1} parent=5 // pred_check
        %p113 = pneg %p112
      $region18: #{tpu_custom_call.1} parent=5 // pred_check_branch
        %115 = sbr.rel (%p113) target = $region20
      $region19: #{tpu_custom_call.1} parent=5 // pred_region
        // Predicated region
        $region21: #{tpu_custom_call.1} parent=19 // pred_check
          %p116 = pneg %p41
        $region22: #{tpu_custom_call.1} parent=19 // pred_check_branch
          %118 = sbr.rel (%p116) target = $region24
        $region23: #{tpu_custom_call.1} parent=19 // pred_region
          %p119 = scmp.lt.s32.totalorder %s21, 1
          %s120 = scalar_select %p119, %s21, 1
          %s121 = smul.addr %s120, 8
          %s122 = scalar_lea.vmem %s1, %s121
        $region24: #{tpu_custom_call.1} parent=19 // pred_fallthru
          _
      $region20: #{tpu_custom_call.1} parent=5 // pred_fallthru
        _
      %p123 = scmp.le.s32.totalorder 1, %s21
      %p124 = scmp.lt.s32.totalorder %s21, 3
      %p125 = pnand %p123, %p124
      %p126 = pneg %p125
      // Predicated region
      $region25: #{tpu_custom_call.1} parent=5 // pred_check
        _
      $region26: #{tpu_custom_call.1} parent=5 // pred_check_branch
        %128 = sbr.rel (%p125) target = $region28
      $region27: #{tpu_custom_call.1} parent=5 // pred_region
        %s129 = ssub.s32 %s21, 1
        %p130 = scmp.lt.s32.totalorder %s26, 1
        %s131 = scalar_select %p130, %s26, 1
        %s132 = smul.addr %s131, 8
        %s133 = scalar_lea.vmem %s1, %s132
        %p134 = pneg %p47
        %p135 = pneg %p44
        %p136 = pneg %p68
        %p137 = pneg %p65
        %p138 = pneg %p94
        %p139 = pneg %p91
        %s140 = sand.u32 %s81, 1
        %s141 = scalar_lea.sflag [#allocation7], %s140
        %s142 = sand.u32 %s81, 1
        %s143 = smul.addr %s142, 8
        %s144 = scalar_lea.vmem [#allocation6], %s143
        %p145 = scmp.lt.s32.totalorder %s26, 1
        %s146 = scalar_select %p145, %s26, 1
        %s147 = smul.addr %s146, 8
        %s148 = scalar_lea.vmem %s1, %s147
        %s149 = sand.u32 %s26, 1
        %p150 = scmp.eq.s32.totalorder %s26, 0
        // Predicated region
        $region29: #{tpu_custom_call.1} parent=27 // pred_check
          %p151 = pneg %p150
        $region30: #{tpu_custom_call.1} parent=27 // pred_check_branch
          %153 = sbr.rel (%p151) target = $region32
        $region31: #{tpu_custom_call.1} parent=27 // pred_region
          %s154 = sld [smem:[#allocation5]]
          %s155 = scalar_lea.hbm %s2, %s154
          // Predicated region
          $region33: #{tpu_custom_call.1} parent=31 // pred_check
            _
          $region34: #{tpu_custom_call.1} parent=31 // pred_check_branch
            %157 = sbr.rel target = $region36
          $region35: #{tpu_custom_call.1} parent=31 // pred_region
            %158 = sst [smem:[#allocation10]] [#allocation9]
            %159 = sst [smem:[#allocation11]] [#allocation8]
          $region36: #{tpu_custom_call.1} parent=31 // pred_fallthru
            _
          %161 = shalt.err (0)
          %s163 = sshll.u32 %s155, 4
          %s164 = int_to_ptr.hbm [resolvable:$true] %s163
          %s165 = sshll.u32 [#allocation2], 4
          %s166 = int_to_ptr.vmem [resolvable:$true] %s165
          %168 = dma.hbm_to_vmem [thread:$0]  %s164, 16, %s166, [#allocation3]
          %s169 = sld [smem:[#allocation5 + $0x1]]
          %s170 = scalar_lea.hbm %s2, %s169
          %s171 = scalar_lea.vmem [#allocation2], 1
          // Predicated region
          $region37: #{tpu_custom_call.1} parent=31 // pred_check
            _
          $region38: #{tpu_custom_call.1} parent=31 // pred_check_branch
            %173 = sbr.rel target = $region40
          $region39: #{tpu_custom_call.1} parent=31 // pred_region
            %174 = sst [smem:[#allocation10]] [#allocation13]
            %175 = sst [smem:[#allocation11]] [#allocation12]
          $region40: #{tpu_custom_call.1} parent=31 // pred_fallthru
            _
          %177 = shalt.err (0)
          %s179 = sshll.u32 %s170, 4
          %s180 = int_to_ptr.hbm [resolvable:$true] %s179
          %s181 = sshll.u32 %s171, 4
          %s182 = int_to_ptr.vmem [resolvable:$true] %s181
          %184 = dma.hbm_to_vmem [thread:$0]  %s180, 16, %s182, [#allocation3]
          %s185 = sld [smem:[#allocation5 + $0x2]]
          %s186 = scalar_lea.hbm %s2, %s185
          %s187 = scalar_lea.vmem [#allocation2], 2
          // Predicated region
          $region41: #{tpu_custom_call.1} parent=31 // pred_check
            _
          $region42: #{tpu_custom_call.1} parent=31 // pred_check_branch
            %189 = sbr.rel target = $region44
          $region43: #{tpu_custom_call.1} parent=31 // pred_region
            %190 = sst [smem:[#allocation10]] [#allocation15]
            %191 = sst [smem:[#allocation11]] [#allocation14]
          $region44: #{tpu_custom_call.1} parent=31 // pred_fallthru
            _
          %193 = shalt.err (0)
          %s195 = sshll.u32 %s186, 4
          %s196 = int_to_ptr.hbm [resolvable:$true] %s195
          %s197 = sshll.u32 %s187, 4
          %s198 = int_to_ptr.vmem [resolvable:$true] %s197
          %200 = dma.hbm_to_vmem [thread:$0]  %s196, 16, %s198, [#allocation3]
          %s201 = sld [smem:[#allocation5 + $0x3]]
          %s202 = scalar_lea.hbm %s2, %s201
          %s203 = scalar_lea.vmem [#allocation2], 3
          // Predicated region
          $region45: #{tpu_custom_call.1} parent=31 // pred_check
            _
          $region46: #{tpu_custom_call.1} parent=31 // pred_check_branch
            %205 = sbr.rel target = $region48
          $region47: #{tpu_custom_call.1} parent=31 // pred_region
            %206 = sst [smem:[#allocation10]] [#allocation17]
            %207 = sst [smem:[#allocation11]] [#allocation16]
          $region48: #{tpu_custom_call.1} parent=31 // pred_fallthru
            _
          %209 = shalt.err (0)
          %s211 = sshll.u32 %s202, 4
          %s212 = int_to_ptr.hbm [resolvable:$true] %s211
          %s213 = sshll.u32 %s203, 4
          %s214 = int_to_ptr.vmem [resolvable:$true] %s213
          %216 = dma.hbm_to_vmem [thread:$0]  %s212, 16, %s214, [#allocation3]
          %s217 = sld [smem:[#allocation5 + $0x4]]
          %s218 = scalar_lea.hbm %s2, %s217
          %s219 = scalar_lea.vmem [#allocation2], 4
          // Predicated region
          $region49: #{tpu_custom_call.1} parent=31 // pred_check
            _
          $region50: #{tpu_custom_call.1} parent=31 // pred_check_branch
            %221 = sbr.rel target = $region52
          $region51: #{tpu_custom_call.1} parent=31 // pred_region
            %222 = sst [smem:[#allocation10]] [#allocation19]
            %223 = sst [smem:[#allocation11]] [#allocation18]
          $region52: #{tpu_custom_call.1} parent=31 // pred_fallthru
            _
          %225 = shalt.err (0)
          %s227 = sshll.u32 %s218, 4
          %s228 = int_to_ptr.hbm [resolvable:$true] %s227
          %s229 = sshll.u32 %s219, 4
          %s230 = int_to_ptr.vmem [resolvable:$true] %s229
          %232 = dma.hbm_to_vmem [thread:$0]  %s228, 16, %s230, [#allocation3]
          %s233 = sld [smem:[#allocation5 + $0x5]]
          %s234 = scalar_lea.hbm %s2, %s233
          %s235 = scalar_lea.vmem [#allocation2], 5
          // Predicated region
          $region53: #{tpu_custom_call.1} parent=31 // pred_check
            _
          $region54: #{tpu_custom_call.1} parent=31 // pred_check_branch
            %237 = sbr.rel target = $region56
          $region55: #{tpu_custom_call.1} parent=31 // pred_region
            %238 = sst [smem:[#allocation10]] [#allocation21]
            %239 = sst [smem:[#allocation11]] [#allocation20]
          $region56: #{tpu_custom_call.1} parent=31 // pred_fallthru
            _
          %241 = shalt.err (0)
          %s243 = sshll.u32 %s234, 4
          %s244 = int_to_ptr.hbm [resolvable:$true] %s243
          %s245 = sshll.u32 %s235, 4
          %s246 = int_to_ptr.vmem [resolvable:$true] %s245
          %248 = dma.hbm_to_vmem [thread:$0]  %s244, 16, %s246, [#allocation3]
          %s249 = sld [smem:[#allocation5 + $0x6]]
          %s250 = scalar_lea.hbm %s2, %s249
          %s251 = scalar_lea.vmem [#allocation2], 6
          // Predicated region
          $region57: #{tpu_custom_call.1} parent=31 // pred_check
            _
          $region58: #{tpu_custom_call.1} parent=31 // pred_check_branch
            %253 = sbr.rel target = $region60
          $region59: #{tpu_custom_call.1} parent=31 // pred_region
            %254 = sst [smem:[#allocation10]] [#allocation23]
            %255 = sst [smem:[#allocation11]] [#allocation22]
          $region60: #{tpu_custom_call.1} parent=31 // pred_fallthru
            _
          %257 = shalt.err (0)
          %s259 = sshll.u32 %s250, 4
          %s260 = int_to_ptr.hbm [resolvable:$true] %s259
          %s261 = sshll.u32 %s251, 4
          %s262 = int_to_ptr.vmem [resolvable:$true] %s261
          %264 = dma.hbm_to_vmem [thread:$0]  %s260, 16, %s262, [#allocation3]
          %s265 = sld [smem:[#allocation5 + $0x7]]
          %s266 = scalar_lea.hbm %s2, %s265
          %s267 = scalar_lea.vmem [#allocation2], 7
          // Predicated region
          $region61: #{tpu_custom_call.1} parent=31 // pred_check
            _
          $region62: #{tpu_custom_call.1} parent=31 // pred_check_branch
            %269 = sbr.rel target = $region64
          $region63: #{tpu_custom_call.1} parent=31 // pred_region
            %270 = sst [smem:[#allocation10]] [#allocation25]
            %271 = sst [smem:[#allocation11]] [#allocation24]
          $region64: #{tpu_custom_call.1} parent=31 // pred_fallthru
            _
          %273 = shalt.err (0)
          %s275 = sshll.u32 %s266, 4
          %s276 = int_to_ptr.hbm [resolvable:$true] %s275
          %s277 = sshll.u32 %s267, 4
          %s278 = int_to_ptr.vmem [resolvable:$true] %s277
          %280 = dma.hbm_to_vmem [thread:$0]  %s276, 16, %s278, [#allocation3]
        $region32: #{tpu_custom_call.1} parent=27 // pred_fallthru
          _
        %s281 = sadd.s32 %s26, 1
        %p282 = scmp.lt.s32.totalorder %s281, 2
        // Predicated region
        $region65: #{tpu_custom_call.1} parent=27 // pred_check
          %p283 = pneg %p282
        $region66: #{tpu_custom_call.1} parent=27 // pred_check_branch
          %285 = sbr.rel (%p283) target = $region68
        $region67: #{tpu_custom_call.1} parent=27 // pred_region
          %s286 = ssub.s32 1, %s149
          %s287 = smul.u32 %s281, 8
          %s288 = sld [smem:[#allocation5 + %s287]]
          %s289 = scalar_lea.hbm %s2, %s288
          %s290 = smul.u32 %s286, 8
          %s291 = scalar_lea.vmem [#allocation2], %s290
          %s292 = scalar_lea.sflag [#allocation3], %s286
          // Predicated region
          $region69: #{tpu_custom_call.1} parent=67 // pred_check
            _
          $region70: #{tpu_custom_call.1} parent=67 // pred_check_branch
            %294 = sbr.rel target = $region72
          $region71: #{tpu_custom_call.1} parent=67 // pred_region
            %295 = sst [smem:[#allocation10]] [#allocation27]
            %296 = sst [smem:[#allocation11]] [#allocation26]
          $region72: #{tpu_custom_call.1} parent=67 // pred_fallthru
            _
          %298 = shalt.err (0)
          %s300 = sshll.u32 %s289, 4
          %s301 = int_to_ptr.hbm [resolvable:$true] %s300
          %s302 = sshll.u32 %s291, 4
          %s303 = int_to_ptr.vmem [resolvable:$true] %s302
          %305 = dma.hbm_to_vmem [thread:$0]  %s301, 16, %s303, %s292
          %s306 = sadd.s32 %s287, 1
          %s307 = sld [smem:[#allocation5 + %s306]]
          %s308 = scalar_lea.hbm %s2, %s307
          %s309 = sadd.s32 1, %s290
          %s310 = scalar_lea.vmem [#allocation2], %s309
          // Predicated region
          $region73: #{tpu_custom_call.1} parent=67 // pred_check
            _
          $region74: #{tpu_custom_call.1} parent=67 // pred_check_branch
            %312 = sbr.rel target = $region76
          $region75: #{tpu_custom_call.1} parent=67 // pred_region
            %313 = sst [smem:[#allocation10]] [#allocation29]
            %314 = sst [smem:[#allocation11]] [#allocation28]
          $region76: #{tpu_custom_call.1} parent=67 // pred_fallthru
            _
          %316 = shalt.err (0)
          %s318 = sshll.u32 %s308, 4
          %s319 = int_to_ptr.hbm [resolvable:$true] %s318
          %s320 = sshll.u32 %s310, 4
          %s321 = int_to_ptr.vmem [resolvable:$true] %s320
          %323 = dma.hbm_to_vmem [thread:$0]  %s319, 16, %s321, %s292
          %s324 = sadd.s32 %s287, 2
          %s325 = sld [smem:[#allocation5 + %s324]]
          %s326 = scalar_lea.hbm %s2, %s325
          %s327 = sadd.s32 2, %s290
          %s328 = scalar_lea.vmem [#allocation2], %s327
          // Predicated region
          $region77: #{tpu_custom_call.1} parent=67 // pred_check
            _
          $region78: #{tpu_custom_call.1} parent=67 // pred_check_branch
            %330 = sbr.rel target = $region80
          $region79: #{tpu_custom_call.1} parent=67 // pred_region
            %331 = sst [smem:[#allocation10]] [#allocation31]
            %332 = sst [smem:[#allocation11]] [#allocation30]
          $region80: #{tpu_custom_call.1} parent=67 // pred_fallthru
            _
          %334 = shalt.err (0)
          %s336 = sshll.u32 %s326, 4
          %s337 = int_to_ptr.hbm [resolvable:$true] %s336
          %s338 = sshll.u32 %s328, 4
          %s339 = int_to_ptr.vmem [resolvable:$true] %s338
          %341 = dma.hbm_to_vmem [thread:$0]  %s337, 16, %s339, %s292
          %s342 = sadd.s32 %s287, 3
          %s343 = sld [smem:[#allocation5 + %s342]]
          %s344 = scalar_lea.hbm %s2, %s343
          %s345 = sadd.s32 3, %s290
          %s346 = scalar_lea.vmem [#allocation2], %s345
          // Predicated region
          $region81: #{tpu_custom_call.1} parent=67 // pred_check
            _
          $region82: #{tpu_custom_call.1} parent=67 // pred_check_branch
            %348 = sbr.rel target = $region84
          $region83: #{tpu_custom_call.1} parent=67 // pred_region
            %349 = sst [smem:[#allocation10]] [#allocation33]
            %350 = sst [smem:[#allocation11]] [#allocation32]
          $region84: #{tpu_custom_call.1} parent=67 // pred_fallthru
            _
          %352 = shalt.err (0)
          %s354 = sshll.u32 %s344, 4
          %s355 = int_to_ptr.hbm [resolvable:$true] %s354
          %s356 = sshll.u32 %s346, 4
          %s357 = int_to_ptr.vmem [resolvable:$true] %s356
          %359 = dma.hbm_to_vmem [thread:$0]  %s355, 16, %s357, %s292
          %s360 = sadd.s32 %s287, 4
          %s361 = sld [smem:[#allocation5 + %s360]]
          %s362 = scalar_lea.hbm %s2, %s361
          %s363 = sadd.s32 4, %s290
          %s364 = scalar_lea.vmem [#allocation2], %s363
          // Predicated region
          $region85: #{tpu_custom_call.1} parent=67 // pred_check
            _
          $region86: #{tpu_custom_call.1} parent=67 // pred_check_branch
            %366 = sbr.rel target = $region88
          $region87: #{tpu_custom_call.1} parent=67 // pred_region
            %367 = sst [smem:[#allocation10]] [#allocation35]
            %368 = sst [smem:[#allocation11]] [#allocation34]
          $region88: #{tpu_custom_call.1} parent=67 // pred_fallthru
            _
          %370 = shalt.err (0)
          %s372 = sshll.u32 %s362, 4
          %s373 = int_to_ptr.hbm [resolvable:$true] %s372
          %s374 = sshll.u32 %s364, 4
          %s375 = int_to_ptr.vmem [resolvable:$true] %s374
          %377 = dma.hbm_to_vmem [thread:$0]  %s373, 16, %s375, %s292
          %s378 = sadd.s32 %s287, 5
          %s379 = sld [smem:[#allocation5 + %s378]]
          %s380 = scalar_lea.hbm %s2, %s379
          %s381 = sadd.s32 5, %s290
          %s382 = scalar_lea.vmem [#allocation2], %s381
          // Predicated region
          $region89: #{tpu_custom_call.1} parent=67 // pred_check
            _
          $region90: #{tpu_custom_call.1} parent=67 // pred_check_branch
            %384 = sbr.rel target = $region92
          $region91: #{tpu_custom_call.1} parent=67 // pred_region
            %385 = sst [smem:[#allocation10]] [#allocation37]
            %386 = sst [smem:[#allocation11]] [#allocation36]
          $region92: #{tpu_custom_call.1} parent=67 // pred_fallthru
            _
          %388 = shalt.err (0)
          %s390 = sshll.u32 %s380, 4
          %s391 = int_to_ptr.hbm [resolvable:$true] %s390
          %s392 = sshll.u32 %s382, 4
          %s393 = int_to_ptr.vmem [resolvable:$true] %s392
          %395 = dma.hbm_to_vmem [thread:$0]  %s391, 16, %s393, %s292
          %s396 = sadd.s32 %s287, 6
          %s397 = sld [smem:[#allocation5 + %s396]]
          %s398 = scalar_lea.hbm %s2, %s397
          %s399 = sadd.s32 6, %s290
          %s400 = scalar_lea.vmem [#allocation2], %s399
          // Predicated region
          $region93: #{tpu_custom_call.1} parent=67 // pred_check
            _
          $region94: #{tpu_custom_call.1} parent=67 // pred_check_branch
            %402 = sbr.rel target = $region96
          $region95: #{tpu_custom_call.1} parent=67 // pred_region
            %403 = sst [smem:[#allocation10]] [#allocation39]
            %404 = sst [smem:[#allocation11]] [#allocation38]
          $region96: #{tpu_custom_call.1} parent=67 // pred_fallthru
            _
          %406 = shalt.err (0)
          %s408 = sshll.u32 %s398, 4
          %s409 = int_to_ptr.hbm [resolvable:$true] %s408
          %s410 = sshll.u32 %s400, 4
          %s411 = int_to_ptr.vmem [resolvable:$true] %s410
          %413 = dma.hbm_to_vmem [thread:$0]  %s409, 16, %s411, %s292
          %s414 = sadd.s32 %s287, 7
          %s415 = sld [smem:[#allocation5 + %s414]]
          %s416 = scalar_lea.hbm %s2, %s415
          %s417 = sadd.s32 7, %s290
          %s418 = scalar_lea.vmem [#allocation2], %s417
          // Predicated region
          $region97: #{tpu_custom_call.1} parent=67 // pred_check
            _
          $region98: #{tpu_custom_call.1} parent=67 // pred_check_branch
            %420 = sbr.rel target = $region100
          $region99: #{tpu_custom_call.1} parent=67 // pred_region
            %421 = sst [smem:[#allocation10]] [#allocation41]
            %422 = sst [smem:[#allocation11]] [#allocation40]
          $region100: #{tpu_custom_call.1} parent=67 // pred_fallthru
            _
          %424 = shalt.err (0)
          %s426 = sshll.u32 %s416, 4
          %s427 = int_to_ptr.hbm [resolvable:$true] %s426
          %s428 = sshll.u32 %s418, 4
          %s429 = int_to_ptr.vmem [resolvable:$true] %s428
          %431 = dma.hbm_to_vmem [thread:$0]  %s427, 16, %s429, %s292
        $region68: #{tpu_custom_call.1} parent=27 // pred_fallthru
          _
        %v432 = vld [vmem:[%s148] sm:$0xff]
        %v433 = vlaneseq
        %v434 = vand.u32 %v433, 127
        %435 = vset.pattern.permute.xlu0 0
        %436 = vperm.xlu0 %435, %v432
        %v437 = vpop.permute.xlu0 %436
        %vm438 = vcmp.eq.s32.totalorder %v434, %v437
        %v439 = vsel %vm438, 1, 0
        %v440 = vcvt.s32.f32 %v439
        %v441 = vld [vmem:[%s3] sm:$0xff]
        %v442 = vld [vmem:[%s3 + $0x8] sm:$0xff]
        %vm443 = vcmask 130048
        %v445 = vsel %vm443, %v440, 0
        %447 = vmatpush.msra.mxu0 0.0
        %448 = vmatpush.msra.mxu0 0.0
        %449 = vmatpush.msra.mxu0 0.0
        %450 = vmatpush.msra.mxu0 0.0
        %451 = vmatpush.msra.mxu0 0.0
        %452 = vmatpush.msra.mxu0 0.0
        %453 = vmatpush.msra.mxu0 0.0
        %454 = vmatpush.msra.mxu0 0.0
        %455 = vmatpush.msra.mxu0 0.0
        %456 = vmatpush.msra.mxu0 0.0
        %457 = vmatpush.msra.mxu0 0.0
        %458 = vmatpush.msra.mxu0 0.0
        %459 = vmatpush.msra.mxu0 0.0
        %460 = vmatpush.msra.mxu0 0.0
        %461 = vmatpush.msra.mxu0 %v442
        %462 = vmatpush.msra.mxu0 %v441
        %463 = vmatmul.f32.gmra.mxu0 %v445
        %v464 = vpop.f32.mrf.mxu0
        %v465 = vadd.f32 0.0, %v464
        %466 = vdwg.mxu0
        %s467 = smul.u32 %s149, 8
        %s468 = scalar_lea.vmem [#allocation2], %s467
        %s469 = scalar_lea.sflag [#allocation3], %s149
        %s470 = smul.u32 8, 1
        %s471 = sshll.u32 %s470, 4
        %472 = dma.done %s469, %s471
        %v473 = vld [vmem:[%s468] sm:$0xff]
        %v474 = vadd.f32 %v473, %v465
        %475 = vst [vmem:[%s144] sm:$0xff] %v474
        %s476 = sand.u32 %s81, 1
        %s477 = scalar_lea.sflag [#allocation7], %s476
        %s478 = sand.u32 %s81, 1
        %s479 = smul.addr %s478, 8
        %s480 = scalar_lea.vmem [#allocation6], %s479
        // Predicated region
        $region101: #{tpu_custom_call.1} parent=27 // pred_check
          %p481 = pneg %p91
        $region102: #{tpu_custom_call.1} parent=27 // pred_check_branch
          %483 = sbr.rel (%p481) target = $region104
        $region103: #{tpu_custom_call.1} parent=27 // pred_region
          %485 = vsyncadd %s477, 0
          %s486 = smul.addr %s26, 8
          %s487 = scalar_lea.hbm %s4, %s486
          %s489 = sshll.u32 %s480, 4
          %s490 = int_to_ptr.vmem [resolvable:$true] %s489
          %s491 = sshll.u32 %s487, 4
          %s492 = int_to_ptr.hbm [resolvable:$true] %s491
          %494 = dma.vmem_to_hbm [thread:$0]  %s490, 128, %s492, %s477
        $region104: #{tpu_custom_call.1} parent=27 // pred_fallthru
          _
      $region28: #{tpu_custom_call.1} parent=5 // pred_fallthru
        _
      %p495 = scmp.le.s32.totalorder 2, %s21
      // Predicated region
      $region105: #{tpu_custom_call.1} parent=5 // pred_check
        %p496 = pneg %p495
      $region106: #{tpu_custom_call.1} parent=5 // pred_check_branch
        %498 = sbr.rel (%p496) target = $region108
      $region107: #{tpu_custom_call.1} parent=5 // pred_region
        %s499 = ssub.s32 %s21, 2
        // Predicated region
        $region109: #{tpu_custom_call.1} parent=107 // pred_check
          %p500 = pneg %p97
        $region110: #{tpu_custom_call.1} parent=107 // pred_check_branch
          %502 = sbr.rel (%p500) target = $region112
        $region111: #{tpu_custom_call.1} parent=107 // pred_region
          %s503 = sand.u32 %s82, 1
          %s504 = scalar_lea.sflag [#allocation7], %s503
          %s505 = sand.u32 %s82, 1
          %s506 = smul.addr %s505, 8
          %s507 = scalar_lea.vmem [#allocation6], %s506
          %509 = dma.done %s504, 128
        $region112: #{tpu_custom_call.1} parent=107 // pred_fallthru
          _
      $region108: #{tpu_custom_call.1} parent=5 // pred_fallthru
        _
    $region6: #{tpu_custom_call.1} parent=1 // loop_footer
      %s25 = sadd.s32 1, %s21
    $region7: #{tpu_custom_call.1} parent=1 // loop_footer_branch
      %20 = sbr.rel target = $region3
    $region8: #{tpu_custom_call.1} parent=1 // loop_exit
      _
    %510 = vsyncpa [#allocation7], 1
    %s511 = scalar_lea.sflag [#allocation7], 1
    %512 = vsyncpa %s511, 1
  %513 = vsyncmov [#allocation3]
  %s514 = vpop.sfrf %513
  %p515 = scmp.eq.s32.totalorder %s514, 0
  %p516 = pneg %p515
  %518 = shalt.err (%p516)
  %s519 = scalar_lea.sflag [#allocation3], 1
  %520 = vsyncmov %s519
  %s521 = vpop.sfrf %520
  %p522 = scmp.eq.s32.totalorder %s521, 0
  %p523 = pneg %p522
  %525 = shalt.err (%p523)

</llo_original>
